<compile_context>
chip_gen: v5e
topology: v5e:2x2
jax: 0.10.0
libtpu: 0.0.40
codegen_flags: <defaults>
</compile_context>

<pallas_src>
import jax
import jax.numpy as jnp
from jax.experimental import pallas as pl
from jax.experimental.pallas import tpu as pltpu

_LANES = 128


def _dice_sums_kernel(logits_ref, labels_ref, inter_ref, card_ref,
                      inter_acc, card_acc):
    # logits_ref: (C, R, 128) float  -- classes leading, dense pixel tiles
    # labels_ref: (R, 128) int32
    # inter_ref / card_ref: (C, 1) output block for this parallel slice
    # inter_acc / card_acc: (C, 1) f32 VMEM scratch accumulators
    n = pl.program_id(1)
    j = pl.program_id(2)

    @pl.when(jnp.logical_and(n == 0, j == 0))
    def _():
        inter_acc[...] = jnp.zeros_like(inter_acc)
        card_acc[...] = jnp.zeros_like(card_acc)

    # Softmax over the class axis (leading dim) -- elementwise over dense
    # (R, 128) per-class tiles, computed in f32 regardless of wire dtype
    # (bf16 logits stay bf16 on the HBM wire).
    x = logits_ref[...].astype(jnp.float32)                  # (C, R, 128)
    m = jnp.max(x, axis=0, keepdims=True)                    # (1, R, 128)
    e = jnp.exp(x - m)
    denom = jnp.sum(e, axis=0, keepdims=True)                # (1, R, 128)
    p = e * pl.reciprocal(denom)                             # exact; EUP slot

    lab = labels_ref[...].astype(jnp.int32)                  # (R, 128)
    cls = jax.lax.broadcasted_iota(jnp.int32, x.shape, 0)    # (C, R, 128)
    mask = cls == lab[None]                                  # bool one-hot

    def _sum_rc(v):  # (C, R, 128) -> (C, 1)
        return jnp.sum(jnp.sum(v, axis=1), axis=-1, keepdims=True)

    inter_acc[...] += _sum_rc(jnp.where(mask, p, 0.0))
    card_acc[...] += _sum_rc(p) + _sum_rc(mask.astype(jnp.float32))

    @pl.when(jnp.logical_and(n == pl.num_programs(1) - 1,
                             j == pl.num_programs(2) - 1))
    def _():
        inter_ref[...] = inter_acc[...]
        card_ref[...] = card_acc[...]


def _round_up(x, m):
    return ((x + m - 1) // m) * m


def _cdiv(a, b):
    return -(-a // b)


def _select_tiling(C, HW, logits_itemsize, labels_itemsize, num_parallel,
                   max_tile_rows):
    """Pick (P, tile_rows, steps, rows_total, vmem_limit) from a byte budget."""
    rows_needed = _cdiv(HW, _LANES)
    P = max(1, int(num_parallel))

    try:
        vmem_cap = int(pltpu.get_tpu_info().vmem_capacity_bytes)
    except Exception:
        vmem_cap = 64 << 20  # conservative (v7x per-TC VMEM)

    # Double-buffered logits + labels blocks kept well under scoped VMEM:
    # ~25 MiB on v7x (64 MiB physical), 48 MiB on v5e/v6e (128 MiB physical).
    ws_budget = min(vmem_cap * 2 // 5, 48 << 20)
    bytes_per_row = _LANES * (C * logits_itemsize + labels_itemsize)

    # Sub-32-bit wire dtypes pack along sublanes -> larger row alignment.
    row_align = 8 * max(1, 4 // max(1, logits_itemsize))

    tile_rows = ws_budget // (2 * bytes_per_row)
    tile_rows = max(row_align, (tile_rows // row_align) * row_align)
    if max_tile_rows is not None:
        tile_rows = max(row_align,
                        min(tile_rows, _round_up(max_tile_rows, row_align)))

    # Never allocate more than one parallel slice's worth of rows.
    per_slice = _round_up(_cdiv(rows_needed, P), row_align)
    tile_rows = min(tile_rows, per_slice)

    steps = _cdiv(rows_needed, P * tile_rows)
    rows_total = P * steps * tile_rows

    working_set = 2 * bytes_per_row * tile_rows   # double-buffered in + labels
    vmem_limit = working_set + (16 << 20)         # headroom: outputs, scratch
    vmem_limit = max(vmem_limit, 32 << 20)
    vmem_limit = min(vmem_limit, vmem_cap * 3 // 4)
    return P, tile_rows, steps, rows_total, int(vmem_limit)


def dice_loss(logits, true, smooth=1.0, ignore_index=255, eps=1e-7,
              num_parallel=2, max_tile_rows=None):
    """Pallas implementation of DiceLoss.forward (multi-class branch).

    logits: (N, C, H, W) float (f32 or bf16 wire dtype; compute is f32)
    true:   (N, 1, H, W) integer class labels in [0, C)
    NOTE: `smooth` and `ignore_index` are unused in the reference forward()
    and are therefore ignored here as well.
    """
    N, C, H, W = logits.shape
    if C == 1:
        # TODO(synk): binary (sigmoid) branch of the reference module not implemented.
        raise NotImplementedError("num_classes == 1 (sigmoid) branch not implemented")

    HW = H * W
    logits_itemsize = jnp.dtype(logits.dtype).itemsize
    P, tile_rows, steps, rows_total, vmem_limit = _select_tiling(
        C, HW, logits_itemsize, 4, num_parallel, max_tile_rows)

    HW_pad = rows_total * _LANES
    pad = HW_pad - HW

    # Trailing-dim merges only (free reshapes).
    logits_flat = logits.reshape(N, C, HW)
    labels_flat = true.reshape(N, HW)
    if labels_flat.dtype != jnp.int32:
        # TODO(synk): keep sub-32-bit label wire dtype (needs 32-row alignment).
        labels_flat = labels_flat.astype(jnp.int32)
    if pad:
        # Pad pixels: logits=0 (softmax -> exactly 1/C per class), label=C
        # (never matches a real class).  `inter` gets 0; `card` gets exactly
        # N*pad/C per class, subtracted analytically below.
        logits_flat = jnp.pad(logits_flat, ((0, 0), (0, 0), (0, pad)))
        labels_flat = jnp.pad(labels_flat, ((0, 0), (0, pad)), constant_values=C)

    logits4 = logits_flat.reshape(N, C, rows_total, _LANES)
    labels3 = labels_flat.reshape(N, rows_total, _LANES)

    def logits_map(p, n, j):
        return (n, 0, p * steps + j, 0)

    def labels_map(p, n, j):
        return (n, p * steps + j, 0)

    def out_map(p, n, j):
        return (p, 0, 0)

    inter, card = pl.pallas_call(
        _dice_sums_kernel,
        out_shape=(
            jax.ShapeDtypeStruct((P, C, 1), jnp.float32),
            jax.ShapeDtypeStruct((P, C, 1), jnp.float32),
        ),
        grid_spec=pltpu.PrefetchScalarGridSpec(
            num_scalar_prefetch=0,
            grid=(P, N, steps),
            in_specs=[
                pl.BlockSpec((None, C, tile_rows, _LANES), logits_map),
                pl.BlockSpec((None, tile_rows, _LANES), labels_map),
            ],
            out_specs=[
                pl.BlockSpec((None, C, 1), out_map),
                pl.BlockSpec((None, C, 1), out_map),
            ],
            scratch_shapes=[
                pltpu.VMEM((C, 1), jnp.float32),
                pltpu.VMEM((C, 1), jnp.float32),
            ],
        ),
        compiler_params=pltpu.CompilerParams(
            dimension_semantics=("parallel", "arbitrary", "arbitrary"),
            vmem_limit_bytes=vmem_limit,
        ),
    )(logits4, labels3)

    inter = jnp.sum(inter[:, :, 0], axis=0)      # (C,)
    card = jnp.sum(card[:, :, 0], axis=0)        # (C,)
    if pad:
        card = card - (N * pad) * (1.0 / C)      # exact pad contribution
    dice = 2.0 * inter / (card + eps)
    return (1.0 - jnp.mean(dice)).astype(jnp.float32)


def _dice_loss_ref(logits, true, eps=1e-7):
    """Pure-JAX reference mirroring the PyTorch forward (multi-class branch)."""
    N, C, H, W = logits.shape
    lab = true.reshape(N, H, W).astype(jnp.int32)
    one_hot = jax.nn.one_hot(lab, C, dtype=jnp.float32)           # (N,H,W,C)
    one_hot = jnp.transpose(one_hot, (0, 3, 1, 2))                # (N,C,H,W)
    probas = jax.nn.softmax(logits.astype(jnp.float32), axis=1)
    inter = jnp.sum(probas * one_hot, axis=(0, 2, 3))
    card = jnp.sum(probas + one_hot, axis=(0, 2, 3))
    dice = 2.0 * inter / (card + eps)
    return 1.0 - jnp.mean(dice)


if __name__ == "__main__":
    key = jax.random.PRNGKey(0)
    k1, k2, k3, k4 = jax.random.split(key, 4)

    # Config A: small spatial extent -> exercises the HW padding path, the
    # analytic `card` correction and the 2-way megacore split.
    N, C, H, W = 2, 4, 16, 16
    logits = jax.random.normal(k1, (N, C, H, W), dtype=jnp.float32)
    true = jax.random.randint(k2, (N, 1, H, W), 0, C, dtype=jnp.int32)
    ref = jax.block_until_ready(_dice_loss_ref(logits, true))
    out = jax.block_until_ready(dice_loss(logits, true))
    assert jnp.allclose(out, ref, atol=1e-4, rtol=1e-4), (out, ref)

    # Config B: 128-aligned spatial extent, no padding, multi-step
    # accumulation per parallel slice (forced small tiles).
    N2, C2, H2, W2 = 2, 4, 64, 64
    logits2 = jax.random.normal(k3, (N2, C2, H2, W2), dtype=jnp.float32)
    true2 = jax.random.randint(k4, (N2, 1, H2, W2), 0, C2, dtype=jnp.int32)
    ref2 = jax.block_until_ready(_dice_loss_ref(logits2, true2))
    out2 = jax.block_until_ready(dice_loss(logits2, true2, max_tile_rows=8))
    assert jnp.allclose(out2, ref2, atol=1e-4, rtol=1e-4), (out2, ref2)

    print("KERNEL_OK")
</pallas_src>

<mosaic_0001>
module attributes {stable_mosaic.version = 11 : i64} {
  func.func @_dice_sums_kernel(%arg0: i32, %arg1: i32, %arg2: i32, %arg3: memref<1x4x8x128xf32, #tpu.memory_space<vmem>>, %arg4: memref<1x8x128xi32, #tpu.memory_space<vmem>>, %arg5: memref<1x4x1xf32, #tpu.memory_space<vmem>>, %arg6: memref<1x4x1xf32, #tpu.memory_space<vmem>>, %arg7: memref<4x1xf32, #tpu.memory_space<vmem>>, %arg8: memref<4x1xf32, #tpu.memory_space<vmem>>) attributes {dimension_semantics = [#tpu.dimension_semantics<parallel>, #tpu.dimension_semantics<arbitrary>, #tpu.dimension_semantics<arbitrary>], iteration_bounds = array<i64: 2, 2, 1>, scalar_prefetch = 0 : i64, scratch_operands = 2 : i64, tpu.core_type = #tpu.core_type<tc>, window_params = [{transform_indices = @transform_0, window_bounds = array<i64: 1, 4, 8, 128>}, {transform_indices = @transform_1, window_bounds = array<i64: 1, 8, 128>}, {transform_indices = @transform_2, window_bounds = array<i64: 1, 4, 1>}, {transform_indices = @transform_3, window_bounds = array<i64: 1, 4, 1>}]} {
    %c0_i32 = arith.constant 0 : i32
    %0 = arith.cmpi eq, %arg1, %c0_i32 : i32
    %c0_i32_0 = arith.constant 0 : i32
    %1 = arith.cmpi eq, %arg2, %c0_i32_0 : i32
    %2 = arith.andi %0, %1 : i1
    %3 = arith.extui %2 : i1 to i32
    %c0_i32_1 = arith.constant 0 : i32
    %4 = arith.cmpi ne, %3, %c0_i32_1 : i32
    scf.if %4 {
      %cst_26 = arith.constant 0.000000e+00 : f32
      %48 = vector.broadcast %cst_26 : f32 to vector<4x1xf32>
      %c0_27 = arith.constant 0 : index
      %c0_28 = arith.constant 0 : index
      %49 = vector.load %arg7[%c0_27, %c0_28] : memref<4x1xf32, #tpu.memory_space<vmem>>, vector<4x1xf32>
      tpu.vector_store %arg7[%c0_27, %c0_28], %48 {strides = array<i32>} : memref<4x1xf32, #tpu.memory_space<vmem>>, vector<4x1xf32>,
      %cst_29 = arith.constant 0.000000e+00 : f32
      %50 = vector.broadcast %cst_29 : f32 to vector<4x1xf32>
      %c0_30 = arith.constant 0 : index
      %c0_31 = arith.constant 0 : index
      %51 = vector.load %arg8[%c0_30, %c0_31] : memref<4x1xf32, #tpu.memory_space<vmem>>, vector<4x1xf32>
      tpu.vector_store %arg8[%c0_30, %c0_31], %50 {strides = array<i32>} : memref<4x1xf32, #tpu.memory_space<vmem>>, vector<4x1xf32>,
    } else {
    }
    %c0 = arith.constant 0 : index
    %c0_2 = arith.constant 0 : index
    %c0_3 = arith.constant 0 : index
    %c0_4 = arith.constant 0 : index
    %5 = vector.load %arg3[%c0, %c0_2, %c0_3, %c0_4] : memref<1x4x8x128xf32, #tpu.memory_space<vmem>>, vector<1x4x8x128xf32>
    %6 = vector.shape_cast %5 : vector<1x4x8x128xf32> to vector<4x8x128xf32>
    %cst = arith.constant dense<0xFF800000> : vector<8x128xf32>
    %7 = vector.multi_reduction <maximumf>, %6, %cst [0] : vector<4x8x128xf32> to vector<8x128xf32>
    %8 = vector.shape_cast %7 : vector<8x128xf32> to vector<1x8x128xf32>
    %9 = vector.broadcast %8 : vector<1x8x128xf32> to vector<4x8x128xf32>
    %10 = arith.subf %6, %9 : vector<4x8x128xf32>
    %11 = math.exp %10 : vector<4x8x128xf32>
    %cst_5 = arith.constant dense<0.000000e+00> : vector<8x128xf32>
    %12 = vector.multi_reduction <add>, %11, %cst_5 [0] : vector<4x8x128xf32> to vector<8x128xf32>
    %13 = vector.shape_cast %12 : vector<8x128xf32> to vector<1x8x128xf32>
    %14 = tpu.reciprocal %13 : vector<1x8x128xf32> -> vector<1x8x128xf32>
    %15 = vector.broadcast %14 : vector<1x8x128xf32> to vector<4x8x128xf32>
    %16 = arith.mulf %11, %15 : vector<4x8x128xf32>
    %c0_6 = arith.constant 0 : index
    %c0_7 = arith.constant 0 : index
    %c0_8 = arith.constant 0 : index
    %17 = vector.load %arg4[%c0_6, %c0_7, %c0_8] : memref<1x8x128xi32, #tpu.memory_space<vmem>>, vector<1x8x128xi32>
    %18 = vector.shape_cast %17 : vector<1x8x128xi32> to vector<8x128xi32>
    %19 = tpu.iota {dimensions = array<i32: 0>} : vector<4x8x128xi32>
    %20 = vector.shape_cast %18 : vector<8x128xi32> to vector<1x8x128xi32>
    %21 = vector.broadcast %20 : vector<1x8x128xi32> to vector<4x8x128xi32>
    %22 = arith.cmpi eq, %19, %21 : vector<4x8x128xi32>
    %c0_9 = arith.constant 0 : index
    %c0_10 = arith.constant 0 : index
    %23 = vector.load %arg7[%c0_9, %c0_10] : memref<4x1xf32, #tpu.memory_space<vmem>>, vector<4x1xf32>
    %cst_11 = arith.constant 0.000000e+00 : f32
    %24 = vector.broadcast %cst_11 : f32 to vector<4x8x128xf32>
    %25 = arith.select %22, %16, %24 : vector<4x8x128xi1>, vector<4x8x128xf32>
    %cst_12 = arith.constant dense<0.000000e+00> : vector<4x128xf32>
    %26 = vector.multi_reduction <add>, %25, %cst_12 [1] : vector<4x8x128xf32> to vector<4x128xf32>
    %cst_13 = arith.constant dense<0.000000e+00> : vector<4xf32>
    %27 = vector.multi_reduction <add>, %26, %cst_13 [1] : vector<4x128xf32> to vector<4xf32>
    %28 = vector.shape_cast %27 : vector<4xf32> to vector<4x1xf32>
    %29 = arith.addf %23, %28 : vector<4x1xf32>
    %c0_14 = arith.constant 0 : index
    %c0_15 = arith.constant 0 : index
    %30 = vector.load %arg7[%c0_14, %c0_15] : memref<4x1xf32, #tpu.memory_space<vmem>>, vector<4x1xf32>
    tpu.vector_store %arg7[%c0_14, %c0_15], %29 {strides = array<i32>} : memref<4x1xf32, #tpu.memory_space<vmem>>, vector<4x1xf32>,
    %c0_16 = arith.constant 0 : index
    %c0_17 = arith.constant 0 : index
    %31 = vector.load %arg8[%c0_16, %c0_17] : memref<4x1xf32, #tpu.memory_space<vmem>>, vector<4x1xf32>
    %cst_18 = arith.constant dense<0.000000e+00> : vector<4x128xf32>
    %32 = vector.multi_reduction <add>, %16, %cst_18 [1] : vector<4x8x128xf32> to vector<4x128xf32>
    %cst_19 = arith.constant dense<0.000000e+00> : vector<4xf32>
    %33 = vector.multi_reduction <add>, %32, %cst_19 [1] : vector<4x128xf32> to vector<4xf32>
    %34 = vector.shape_cast %33 : vector<4xf32> to vector<4x1xf32>
    %35 = arith.extui %22 : vector<4x8x128xi1> to vector<4x8x128xi32>
    %36 = arith.sitofp %35 : vector<4x8x128xi32> to vector<4x8x128xf32>
    %cst_20 = arith.constant dense<0.000000e+00> : vector<4x128xf32>
    %37 = vector.multi_reduction <add>, %36, %cst_20 [1] : vector<4x8x128xf32> to vector<4x128xf32>
    %cst_21 = arith.constant dense<0.000000e+00> : vector<4xf32>
    %38 = vector.multi_reduction <add>, %37, %cst_21 [1] : vector<4x128xf32> to vector<4xf32>
    %39 = vector.shape_cast %38 : vector<4xf32> to vector<4x1xf32>
    %40 = arith.addf %34, %39 : vector<4x1xf32>
    %41 = arith.addf %31, %40 : vector<4x1xf32>
    %c0_22 = arith.constant 0 : index
    %c0_23 = arith.constant 0 : index
    %42 = vector.load %arg8[%c0_22, %c0_23] : memref<4x1xf32, #tpu.memory_space<vmem>>, vector<4x1xf32>
    tpu.vector_store %arg8[%c0_22, %c0_23], %41 {strides = array<i32>} : memref<4x1xf32, #tpu.memory_space<vmem>>, vector<4x1xf32>,
    %c1_i32 = arith.constant 1 : i32
    %43 = arith.cmpi eq, %arg1, %c1_i32 : i32
    %c0_i32_24 = arith.constant 0 : i32
    %44 = arith.cmpi eq, %arg2, %c0_i32_24 : i32
    %45 = arith.andi %43, %44 : i1
    %46 = arith.extui %45 : i1 to i32
    %c0_i32_25 = arith.constant 0 : i32
    %47 = arith.cmpi ne, %46, %c0_i32_25 : i32
    scf.if %47 {
      %c0_26 = arith.constant 0 : index
      %c0_27 = arith.constant 0 : index
      %48 = vector.load %arg7[%c0_26, %c0_27] : memref<4x1xf32, #tpu.memory_space<vmem>>, vector<4x1xf32>
      %c0_28 = arith.constant 0 : index
      %c0_29 = arith.constant 0 : index
      %c0_30 = arith.constant 0 : index
      %49 = vector.load %arg5[%c0_28, %c0_29, %c0_30] : memref<1x4x1xf32, #tpu.memory_space<vmem>>, vector<1x4x1xf32>
      %50 = vector.shape_cast %49 : vector<1x4x1xf32> to vector<4x1xf32>
      %51 = vector.shape_cast %48 : vector<4x1xf32> to vector<1x4x1xf32>
      tpu.vector_store %arg5[%c0_28, %c0_29, %c0_30], %51 {strides = array<i32>} : memref<1x4x1xf32, #tpu.memory_space<vmem>>, vector<1x4x1xf32>,
      %c0_31 = arith.constant 0 : index
      %c0_32 = arith.constant 0 : index
      %52 = vector.load %arg8[%c0_31, %c0_32] : memref<4x1xf32, #tpu.memory_space<vmem>>, vector<4x1xf32>
      %c0_33 = arith.constant 0 : index
      %c0_34 = arith.constant 0 : index
      %c0_35 = arith.constant 0 : index
      %53 = vector.load %arg6[%c0_33, %c0_34, %c0_35] : memref<1x4x1xf32, #tpu.memory_space<vmem>>, vector<1x4x1xf32>
      %54 = vector.shape_cast %53 : vector<1x4x1xf32> to vector<4x1xf32>
      %55 = vector.shape_cast %52 : vector<4x1xf32> to vector<1x4x1xf32>
      tpu.vector_store %arg6[%c0_33, %c0_34, %c0_35], %55 {strides = array<i32>} : memref<1x4x1xf32, #tpu.memory_space<vmem>>, vector<1x4x1xf32>,
    } else {
    }
    return
  }
  func.func @transform_0(%arg0: i32, %arg1: i32, %arg2: i32) -> (i32, i32, i32, i32) {
    %c1_i32 = arith.constant 1 : i32
    %0 = arith.muli %arg0, %c1_i32 : i32
    %1 = arith.addi %0, %arg2 : i32
    %c0_i32 = arith.constant 0 : i32
    %c0_i32_0 = arith.constant 0 : i32
    %c0_i32_1 = arith.constant 0 : i32
    return %arg1, %c0_i32, %1, %c0_i32_0 : i32, i32, i32, i32
  }
  func.func @transform_1(%arg0: i32, %arg1: i32, %arg2: i32) -> (i32, i32, i32) {
    %c1_i32 = arith.constant 1 : i32
    %0 = arith.muli %arg0, %c1_i32 : i32
    %1 = arith.addi %0, %arg2 : i32
    %c0_i32 = arith.constant 0 : i32
    %c0_i32_0 = arith.constant 0 : i32
    return %arg1, %1, %c0_i32 : i32, i32, i32
  }
  func.func @transform_2(%arg0: i32, %arg1: i32, %arg2: i32) -> (i32, i32, i32) {
    %c0_i32 = arith.constant 0 : i32
    %c0_i32_0 = arith.constant 0 : i32
    %c0_i32_1 = arith.constant 0 : i32
    return %arg0, %c0_i32, %c0_i32_0 : i32, i32, i32
  }
  func.func @transform_3(%arg0: i32, %arg1: i32, %arg2: i32) -> (i32, i32, i32) {
    %c0_i32 = arith.constant 0 : i32
    %c0_i32_0 = arith.constant 0 : i32
    %c0_i32_1 = arith.constant 0 : i32
    return %arg0, %c0_i32, %c0_i32_0 : i32, i32, i32
  }
}

</mosaic_0001>

<llo_original>
// kernel: tpu_custom_call.1
$region0: #{tpu_custom_call.1}
  #allocation0 [shape = 'u32[]', space=smem, size = 0x4, offset = 0x4, fixed_abs, tag = 'smem constant byte address 0x4 - core index']
  #allocation1 [shape = 'u32[72,128]{1,0:T(1,128)}', space=vmem, size = 0x9000, scoped, tag = 'internal scratch']
  #allocation2 [shape = 'f32[4,1]{1,0:T(4,128)}', space=vmem, size = 0x800, scoped, tag = 'scratch operand']
  #allocation3 [shape = 'f32[4,1]{1,0:T(4,128)}', space=vmem, size = 0x800, scoped, tag = 'scratch operand']
  %s0 = inlined_call_operand.hbm [shape: f32[2,4,16,128], index: 0, kind: input, shape index: {}]
  %s1 = inlined_call_operand.hbm [shape: s32[2,16,128], index: 1, kind: input, shape index: {}]
  %s2 = inlined_call_operand.vmem [shape: f32[2,4,1], index: 2, kind: output, shape index: {0}]
  %s3 = inlined_call_operand.vmem [shape: f32[2,4,1], index: 3, kind: output, shape index: {1}]
  %4 = xla_tuple %s2, %s3
  %s5 = sld [smem:[#allocation0]]
  $region65: #{tpu_custom_call.1} parent=0
    _
  %s7 = ssub.s32 1, %s5
  %s8 = scalar_select 0, %s7, %s5
  $region1: #{tpu_custom_call.1} parent=0
    #allocation4 [shape = 'u8[32768]{0}', space=vmem, size = 0x8000, scoped, tag = 'input window, operand 0']
    #allocation5 [shape = 's32[2]{0}', space=sflag, size = 0x8, scoped, tag = 'scoped memory for tpu_custom_call.1']
    #allocation6 [shape = 'u8[8192]{0}', space=vmem, size = 0x2000, scoped, tag = 'input window, operand 1']
    #allocation7 [shape = 's32[2]{0}', space=sflag, size = 0x8, scoped, tag = 'scoped memory for tpu_custom_call.1']
    %9 = vsyncpa [#allocation5], 0
    %s10 = scalar_lea.sflag [#allocation5], 1
    %11 = vsyncpa %s10, 0
    %12 = vsyncpa [#allocation7], 0
    %s13 = scalar_lea.sflag [#allocation7], 1
    %14 = vsyncpa %s13, 0
    loop: start=0, step=1, limit=6
    $region2: #{tpu_custom_call.1} parent=1 // loop_pre_header
      _
    $region3: #{tpu_custom_call.1} parent=1 // loop_header
      %s16 = sphi 0, %s20
      %p17 = scmp.ge.s32.totalorder %s16, 6
      %s23 = sphi 0, %s42
      %s24 = sphi 0, %s38
      %s25 = sphi 0, %s34
      %s26 = sphi 0, %s23
      %s27 = sphi 0, %s24
      %s28 = sphi 0, %s25
      %s29 = sphi 0, %s26
      %s30 = sphi 0, %s27
      %s31 = sphi 0, %s28
      %s49 = sphi 0, %s51
      %s52 = sphi 0, %s49
      %s53 = sphi 0, %s52
      %s69 = sphi 0, %s53
      %s79 = sphi 0, %s81
      %s82 = sphi 0, %s79
      %s83 = sphi 0, %s82
      %s99 = sphi 0, %s83
      %s105 = sphi 0, %s107
      %s108 = sphi 0, %s105
      %s109 = sphi 0, %s108
      %s125 = sphi 0, %s109
      %s131 = sphi 0, %s133
      %s134 = sphi 0, %s131
      %s135 = sphi 0, %s134
      %s151 = sphi 0, %s135
    $region4: #{tpu_custom_call.1} parent=1 // loop_header_branch
      %19 = sbr.rel (%p17) target = $region8
    $region5: #{tpu_custom_call.1} parent=1 // loop_body
      %s21 = ssub.s32 %s16, 1
      %s22 = ssub.s32 %s16, 2
      %s32 = sadd.s32 1, %s25
      %p33 = scmp.ge.s32.totalorder %s32, 1
      %s34 = scalar_select %p33, 0, %s32
      %s35 = sadd.s32 1, %s24
      %s36 = scalar_select %p33, %s35, %s24
      %p37 = scmp.ge.s32.totalorder %s36, 2
      %s38 = scalar_select %p37, 0, %s36
      %s39 = sadd.s32 1, %s23
      %s40 = scalar_select %p37, %s39, %s23
      %p41 = scmp.ge.s32.totalorder %s40, 2
      %s42 = scalar_select %p41, 0, %s40
      %s43 = sadd.s32 %s23, %s25
      %s44 = sadd.s32 %s42, %s34
      %s45 = ssub.s32 %s24, %s38
      %s46 = ssub.s32 %s43, %s44
      %s47 = sor.u32 %s45, %s46
      %p48 = scmp.eq.s32.totalorder %s47, 0
      %s50 = sadd.s32 %s49, 1
      %s51 = scalar_select %p48, %s49, %s50
      %p54 = pneg %p48
      %p55 = scmp.eq.s32.totalorder %s16, 3
      %p56 = por %p54, %p55
      %p57 = scmp.ne.s32.totalorder %s49, %s52
      %p58 = scmp.eq.s32.totalorder %s16, 0
      %p59 = por %p57, %p58
      %p60 = scmp.ne.s32.totalorder %s49, %s52
      %p61 = scmp.eq.s32.totalorder %s21, 3
      %p62 = por %p60, %p61
      %p63 = scmp.ne.s32.totalorder %s52, %s53
      %p64 = scmp.eq.s32.totalorder %s21, 0
      %p65 = por %p63, %p64
      %p66 = scmp.ne.s32.totalorder %s52, %s53
      %p67 = scmp.eq.s32.totalorder %s22, 3
      %p68 = por %p66, %p67
      %p70 = scmp.ne.s32.totalorder %s53, %s69
      %p71 = scmp.eq.s32.totalorder %s22, 0
      %p72 = por %p70, %p71
      %s73 = sadd.s32 %s23, %s25
      %s74 = sadd.s32 %s42, %s34
      %s75 = ssub.s32 %s24, %s38
      %s76 = ssub.s32 %s73, %s74
      %s77 = sor.u32 %s75, %s76
      %p78 = scmp.eq.s32.totalorder %s77, 0
      %s80 = sadd.s32 %s79, 1
      %s81 = scalar_select %p78, %s79, %s80
      %p84 = pneg %p78
      %p85 = scmp.eq.s32.totalorder %s16, 3
      %p86 = por %p84, %p85
      %p87 = scmp.ne.s32.totalorder %s79, %s82
      %p88 = scmp.eq.s32.totalorder %s16, 0
      %p89 = por %p87, %p88
      %p90 = scmp.ne.s32.totalorder %s79, %s82
      %p91 = scmp.eq.s32.totalorder %s21, 3
      %p92 = por %p90, %p91
      %p93 = scmp.ne.s32.totalorder %s82, %s83
      %p94 = scmp.eq.s32.totalorder %s21, 0
      %p95 = por %p93, %p94
      %p96 = scmp.ne.s32.totalorder %s82, %s83
      %p97 = scmp.eq.s32.totalorder %s22, 3
      %p98 = por %p96, %p97
      %p100 = scmp.ne.s32.totalorder %s83, %s99
      %p101 = scmp.eq.s32.totalorder %s22, 0
      %p102 = por %p100, %p101
      %s103 = ssub.s32 %s23, %s42
      %p104 = scmp.eq.s32.totalorder %s103, 0
      %s106 = sadd.s32 %s105, 1
      %s107 = scalar_select %p104, %s105, %s106
      %p110 = pneg %p104
      %p111 = scmp.eq.s32.totalorder %s16, 3
      %p112 = por %p110, %p111
      %p113 = scmp.ne.s32.totalorder %s105, %s108
      %p114 = scmp.eq.s32.totalorder %s16, 0
      %p115 = por %p113, %p114
      %p116 = scmp.ne.s32.totalorder %s105, %s108
      %p117 = scmp.eq.s32.totalorder %s21, 3
      %p118 = por %p116, %p117
      %p119 = scmp.ne.s32.totalorder %s108, %s109
      %p120 = scmp.eq.s32.totalorder %s21, 0
      %p121 = por %p119, %p120
      %p122 = scmp.ne.s32.totalorder %s108, %s109
      %p123 = scmp.eq.s32.totalorder %s22, 3
      %p124 = por %p122, %p123
      %p126 = scmp.ne.s32.totalorder %s109, %s125
      %p127 = scmp.eq.s32.totalorder %s22, 0
      %p128 = por %p126, %p127
      %s129 = ssub.s32 %s23, %s42
      %p130 = scmp.eq.s32.totalorder %s129, 0
      %s132 = sadd.s32 %s131, 1
      %s133 = scalar_select %p130, %s131, %s132
      %p136 = pneg %p130
      %p137 = scmp.eq.s32.totalorder %s16, 3
      %p138 = por %p136, %p137
      %p139 = scmp.ne.s32.totalorder %s131, %s134
      %p140 = scmp.eq.s32.totalorder %s16, 0
      %p141 = por %p139, %p140
      %p142 = scmp.ne.s32.totalorder %s131, %s134
      %p143 = scmp.eq.s32.totalorder %s21, 3
      %p144 = por %p142, %p143
      %p145 = scmp.ne.s32.totalorder %s134, %s135
      %p146 = scmp.eq.s32.totalorder %s21, 0
      %p147 = por %p145, %p146
      %p148 = scmp.ne.s32.totalorder %s134, %s135
      %p149 = scmp.eq.s32.totalorder %s22, 3
      %p150 = por %p148, %p149
      %p152 = scmp.ne.s32.totalorder %s135, %s151
      %p153 = scmp.eq.s32.totalorder %s22, 0
      %p154 = por %p152, %p153
      %p155 = scmp.le.s32.totalorder 1, %s16
      %p156 = scmp.lt.s32.totalorder %s16, 5
      %p157 = pnand %p155, %p156
      %p158 = pneg %p157
      // Predicated region
      $region9: #{tpu_custom_call.1} parent=5 // pred_check
        _
      $region10: #{tpu_custom_call.1} parent=5 // pred_check_branch
        %160 = sbr.rel (%p157) target = $region12
      $region11: #{tpu_custom_call.1} parent=5 // pred_region
        %s161 = ssub.s32 %s16, 1
      $region12: #{tpu_custom_call.1} parent=5 // pred_fallthru
        _
      %p162 = scmp.lt.s32.totalorder %s16, 4
      // Predicated region
      $region13: #{tpu_custom_call.1} parent=5 // pred_check
        %p163 = pneg %p162
      $region14: #{tpu_custom_call.1} parent=5 // pred_check_branch
        %165 = sbr.rel (%p163) target = $region16
      $region15: #{tpu_custom_call.1} parent=5 // pred_region
        // Predicated region
        $region17: #{tpu_custom_call.1} parent=15 // pred_check
          %p166 = pneg %p59
        $region18: #{tpu_custom_call.1} parent=15 // pred_check_branch
          %168 = sbr.rel (%p166) target = $region20
        $region19: #{tpu_custom_call.1} parent=15 // pred_region
          %s169 = sand.u32 %s49, 1
          %s170 = scalar_lea.sflag [#allocation5], %s169
          %s171 = sand.u32 %s49, 1
          %s172 = smul.addr %s171, 32
          %s173 = scalar_lea.vmem [#allocation4], %s172
          %s174 = sadd.s32 %s23, %s25
          %176 = vsyncadd %s170, 0
          %s177 = smul.addr %s24, 8
          %s178 = sadd.s32 %s174, %s177
          %s179 = smul.addr %s178, 8
          %s180 = scalar_lea.hbm %s0, %s179
          %s181 = sshll.u32 %s180, 4
          %s182 = int_to_ptr.hbm [resolvable:$true] %s181
          %s183 = sshll.u32 %s173, 4
          %s184 = int_to_ptr.vmem [resolvable:$true] %s183
          %189 = dma.hbm_to_vmem [thread:$0]  %s182, 512, %s184, %s170, 256, 128, 8
        $region20: #{tpu_custom_call.1} parent=15 // pred_fallthru
          _
        // Predicated region
        $region21: #{tpu_custom_call.1} parent=15 // pred_check
          %p190 = pneg %p89
        $region22: #{tpu_custom_call.1} parent=15 // pred_check_branch
          %192 = sbr.rel (%p190) target = $region24
        $region23: #{tpu_custom_call.1} parent=15 // pred_region
          %s193 = sand.u32 %s79, 1
          %s194 = scalar_lea.sflag [#allocation7], %s193
          %s195 = sand.u32 %s79, 1
          %s196 = smul.addr %s195, 8
          %s197 = scalar_lea.vmem [#allocation6], %s196
          %s198 = sadd.s32 %s23, %s25
          %200 = vsyncadd %s194, 0
          %s201 = smul.addr %s24, 2
          %s202 = sadd.s32 %s198, %s201
          %s203 = smul.addr %s202, 8
          %s204 = scalar_lea.hbm %s1, %s203
          %s206 = sshll.u32 %s204, 4
          %s207 = int_to_ptr.hbm [resolvable:$true] %s206
          %s208 = sshll.u32 %s197, 4
          %s209 = int_to_ptr.vmem [resolvable:$true] %s208
          %211 = dma.hbm_to_vmem [thread:$0]  %s207, 128, %s209, %s194
        $region24: #{tpu_custom_call.1} parent=15 // pred_fallthru
          _
      $region16: #{tpu_custom_call.1} parent=5 // pred_fallthru
        _
      %p212 = scmp.le.s32.totalorder 1, %s16
      %p213 = scmp.lt.s32.totalorder %s16, 5
      %p214 = pnand %p212, %p213
      %p215 = pneg %p214
      // Predicated region
      $region25: #{tpu_custom_call.1} parent=5 // pred_check
        _
      $region26: #{tpu_custom_call.1} parent=5 // pred_check_branch
        %217 = sbr.rel (%p214) target = $region28
      $region27: #{tpu_custom_call.1} parent=5 // pred_region
        %s218 = ssub.s32 %s16, 1
        %s219 = sand.u32 %s52, 1
        %s220 = scalar_lea.sflag [#allocation5], %s219
        %s221 = sand.u32 %s52, 1
        %s222 = smul.addr %s221, 32
        %s223 = scalar_lea.vmem [#allocation4], %s222
        // Predicated region
        $region29: #{tpu_custom_call.1} parent=27 // pred_check
          %p224 = pneg %p65
        $region30: #{tpu_custom_call.1} parent=27 // pred_check_branch
          %226 = sbr.rel (%p224) target = $region32
        $region31: #{tpu_custom_call.1} parent=27 // pred_region
          %228 = dma.done %s220, 512
        $region32: #{tpu_custom_call.1} parent=27 // pred_fallthru
          _
        %s229 = sand.u32 %s82, 1
        %s230 = scalar_lea.sflag [#allocation7], %s229
        %s231 = sand.u32 %s82, 1
        %s232 = smul.addr %s231, 8
        %s233 = scalar_lea.vmem [#allocation6], %s232
        // Predicated region
        $region33: #{tpu_custom_call.1} parent=27 // pred_check
          %p234 = pneg %p95
        $region34: #{tpu_custom_call.1} parent=27 // pred_check_branch
          %236 = sbr.rel (%p234) target = $region36
        $region35: #{tpu_custom_call.1} parent=27 // pred_region
          %238 = dma.done %s230, 128
        $region36: #{tpu_custom_call.1} parent=27 // pred_fallthru
          _
        %s239 = sand.u32 %s52, 1
        %s240 = scalar_lea.sflag [#allocation5], %s239
        %s241 = sand.u32 %s52, 1
        %s242 = smul.addr %s241, 32
        %s243 = scalar_lea.vmem [#allocation4], %s242
        %p244 = pneg %p65
        %p245 = pneg %p62
        %s246 = sand.u32 %s82, 1
        %s247 = scalar_lea.sflag [#allocation7], %s246
        %s248 = sand.u32 %s82, 1
        %s249 = smul.addr %s248, 8
        %s250 = scalar_lea.vmem [#allocation6], %s249
        %p251 = pneg %p95
        %p252 = pneg %p92
        %p253 = pneg %p121
        %p254 = pneg %p118
        %p255 = scmp.lt.s32.totalorder %s26, 1
        %s256 = scalar_select %p255, %s26, 1
        %s257 = smul.addr %s256, 4
        %s258 = scalar_lea.vmem %s2, %s257
        %p259 = pneg %p147
        %p260 = pneg %p144
        %p261 = scmp.lt.s32.totalorder %s26, 1
        %s262 = scalar_select %p261, %s26, 1
        %s263 = smul.addr %s262, 4
        %s264 = scalar_lea.vmem %s3, %s263
        %s265 = sadd.s32 %s26, %s28
        %s266 = sadd.s32 %s26, %s28
        %p267 = scmp.lt.s32.totalorder %s26, 1
        %s268 = scalar_select %p267, %s26, 1
        %s269 = smul.addr %s268, 4
        %s270 = scalar_lea.vmem %s2, %s269
        %p271 = scmp.lt.s32.totalorder %s26, 1
        %s272 = scalar_select %p271, %s26, 1
        %s273 = smul.addr %s272, 4
        %s274 = scalar_lea.vmem %s3, %s273
        %p275 = scmp.eq.s32.totalorder %s27, 0
        %p276 = scmp.eq.s32.totalorder %s28, 0
        %p277 = pnand %p275, %p276
        %p278 = pneg %p277
        // Predicated region
        $region37: #{tpu_custom_call.1} parent=27 // pred_check
          _
        $region38: #{tpu_custom_call.1} parent=27 // pred_check_branch
          %280 = sbr.rel (%p277) target = $region40
        $region39: #{tpu_custom_call.1} parent=27 // pred_region
          %vm281 = vcmask 3072
          %282 = vst.msk [vmem:[#allocation2] sm:$0xf] %vm281, 0.0
          %283 = vst.msk [vmem:[#allocation3] sm:$0xf] %vm281, 0.0
        $region40: #{tpu_custom_call.1} parent=27 // pred_fallthru
          _
        %v284 = vld [vmem:[%s223] sm:$0xff]
        %v285 = vld [vmem:[%s223 + $0x8] sm:$0xff]
        %v286 = vld [vmem:[%s223 + $0x10] sm:$0xff]
        %v287 = vld [vmem:[%s223 + $0x18] sm:$0xff]
        %v288 = vmax.f32 %v284, %v285
        %v289 = vmax.f32 %v286, %v287
        %v290 = vmax.f32 %v288, %v289
        %v291 = vsub.f32 %v284, %v290
        %v292 = vsub.f32 %v285, %v290
        %v293 = vsub.f32 %v286, %v290
        %v294 = vsub.f32 %v287, %v290
        %v295 = vmul.f32 %v291, 1.442695
        %v296 = vpow.pop %v295
        %v297 = vmul.f32 %v292, 1.442695
        %v298 = vpow.pop %v297
        %v299 = vmul.f32 %v293, 1.442695
        %v300 = vpow.pop %v299
        %v301 = vmul.f32 %v294, 1.442695
        %v302 = vpow.pop %v301
        %v303 = vadd.f32 %v296, %v298
        %v304 = vadd.f32 %v303, %v300
        %v305 = vadd.f32 %v304, %v302
        %v306 = vrcp.pop %v305
        %v307 = vmul.f32 %v305, %v306
        %v308 = vsub.f32 1.0, %v307
        %v309 = vmul.f32 %v306, %v308
        %v310 = vadd.f32 %v306, %v309
        %vm311 = vweird.f32 %v305
        %vm312 = vweird.f32 %v306
        %vm313 = vmor %vm311, %vm312
        %v314 = vsel %vm313, %v306, %v310
        %v315 = vand.u32 2147483647, %v305
        %vm316 = vcmp.eq.f32.partialorder %v315, 8.507059e+37
        %v317 = vand.u32 %v305, 2147483648
        %v318 = vor.u32 1.1754944e-38, %v317
        %v319 = vsel %vm316, %v318, %v314
        %v320 = vmul.f32 %v296, %v319
        %v321 = vmul.f32 %v298, %v319
        %v322 = vmul.f32 %v300, %v319
        %v323 = vmul.f32 %v302, %v319
        %v324 = vld [vmem:[%s233] sm:$0xff]
        %vm325 = vcmp.eq.s32.totalorder %v324, 0
        %vm326 = vcmp.eq.s32.totalorder %v324, 1
        %vm327 = vcmp.eq.s32.totalorder %v324, 2
        %vm328 = vcmp.eq.s32.totalorder %v324, 3
        %v329 = vld [vmem:[#allocation2] sm:$0xf]
        %v330 = vsel %vm325, %v320, 0.0
        %v331 = vsel %vm326, %v321, 0.0
        %v332 = vsel %vm327, %v322, 0.0
        %v333 = vsel %vm328, %v323, 0.0
        %v334 = vrot.slane %v330, 4
        %v335 = vadd.f32 %v330, %v334
        %v336 = vrot.slane %v335, 2
        %v337 = vadd.f32 %v335, %v336
        %v338 = vrot.slane %v337, 1
        %v339 = vadd.f32 %v337, %v338
        %v340 = vrot.slane %v331, 4
        %v341 = vadd.f32 %v331, %v340
        %v342 = vrot.slane %v341, 2
        %v343 = vadd.f32 %v341, %v342
        %v344 = vrot.slane %v343, 1
        %v345 = vadd.f32 %v343, %v344
        %v346 = vrot.slane %v332, 4
        %v347 = vadd.f32 %v332, %v346
        %v348 = vrot.slane %v347, 2
        %v349 = vadd.f32 %v347, %v348
        %v350 = vrot.slane %v349, 1
        %v351 = vadd.f32 %v349, %v350
        %v352 = vrot.slane %v333, 4
        %v353 = vadd.f32 %v333, %v352
        %v354 = vrot.slane %v353, 2
        %v355 = vadd.f32 %v353, %v354
        %v356 = vrot.slane %v355, 1
        %v357 = vadd.f32 %v355, %v356
        %vm362 = vcmask 1041409
        %v363 = vsel %vm362, %v345, %v339
        %vm364 = vcmask 1042434
        %v365 = vsel %vm364, %v351, %v363
        %vm366 = vcmask 1043459
        %v367 = vsel %vm366, %v357, %v365
        %vm369 = vcmask 1043456
        %v370 = vsel %vm369, %v367, 0.0
        %371 = vadd.xlane.f32.xlu0 %v370
        %v372 = vpop.xlane.xlu0 %371
        %v373 = vadd.f32 %v329, %v372
        %vm374 = vcmask 3072
        %375 = vst.msk [vmem:[#allocation2] sm:$0xf] %vm374, %v373
        %v376 = vld [vmem:[#allocation3] sm:$0xf]
        %v377 = vrot.slane %v320, 4
        %v378 = vadd.f32 %v320, %v377
        %v379 = vrot.slane %v378, 2
        %v380 = vadd.f32 %v378, %v379
        %v381 = vrot.slane %v380, 1
        %v382 = vadd.f32 %v380, %v381
        %v383 = vrot.slane %v321, 4
        %v384 = vadd.f32 %v321, %v383
        %v385 = vrot.slane %v384, 2
        %v386 = vadd.f32 %v384, %v385
        %v387 = vrot.slane %v386, 1
        %v388 = vadd.f32 %v386, %v387
        %v389 = vrot.slane %v322, 4
        %v390 = vadd.f32 %v322, %v389
        %v391 = vrot.slane %v390, 2
        %v392 = vadd.f32 %v390, %v391
        %v393 = vrot.slane %v392, 1
        %v394 = vadd.f32 %v392, %v393
        %v395 = vrot.slane %v323, 4
        %v396 = vadd.f32 %v323, %v395
        %v397 = vrot.slane %v396, 2
        %v398 = vadd.f32 %v396, %v397
        %v399 = vrot.slane %v398, 1
        %v400 = vadd.f32 %v398, %v399
        %v405 = vsel %vm362, %v388, %v382
        %v406 = vsel %vm364, %v394, %v405
        %v407 = vsel %vm366, %v400, %v406
        %v409 = vsel %vm369, %v407, 0.0
        %410 = vadd.xlane.f32.xlu0 %v409
        %v411 = vpop.xlane.xlu0 %410
        %v412 = vsel %vm325, 1, 0
        %v413 = vsel %vm326, 1, 0
        %v414 = vsel %vm327, 1, 0
        %v415 = vsel %vm328, 1, 0
        %v416 = vcvt.s32.f32 %v412
        %v417 = vcvt.s32.f32 %v413
        %v418 = vcvt.s32.f32 %v414
        %v419 = vcvt.s32.f32 %v415
        %v420 = vrot.slane %v416, 4
        %v421 = vadd.f32 %v416, %v420
        %v422 = vrot.slane %v421, 2
        %v423 = vadd.f32 %v421, %v422
        %v424 = vrot.slane %v423, 1
        %v425 = vadd.f32 %v423, %v424
        %v426 = vrot.slane %v417, 4
        %v427 = vadd.f32 %v417, %v426
        %v428 = vrot.slane %v427, 2
        %v429 = vadd.f32 %v427, %v428
        %v430 = vrot.slane %v429, 1
        %v431 = vadd.f32 %v429, %v430
        %v432 = vrot.slane %v418, 4
        %v433 = vadd.f32 %v418, %v432
        %v434 = vrot.slane %v433, 2
        %v435 = vadd.f32 %v433, %v434
        %v436 = vrot.slane %v435, 1
        %v437 = vadd.f32 %v435, %v436
        %v438 = vrot.slane %v419, 4
        %v439 = vadd.f32 %v419, %v438
        %v440 = vrot.slane %v439, 2
        %v441 = vadd.f32 %v439, %v440
        %v442 = vrot.slane %v441, 1
        %v443 = vadd.f32 %v441, %v442
        %v448 = vsel %vm362, %v431, %v425
        %v449 = vsel %vm364, %v437, %v448
        %v450 = vsel %vm366, %v443, %v449
        %v452 = vsel %vm369, %v450, 0.0
        %453 = vadd.xlane.f32.xlu0 %v452
        %v454 = vpop.xlane.xlu0 %453
        %v455 = vadd.f32 %v411, %v454
        %v456 = vadd.f32 %v376, %v455
        %457 = vst.msk [vmem:[#allocation3] sm:$0xf] %vm374, %v456
        %p458 = scmp.eq.s32.totalorder %s27, 1
        %p459 = pnand %p458, %p276
        %p460 = pneg %p459
        // Predicated region
        $region41: #{tpu_custom_call.1} parent=27 // pred_check
          _
        $region42: #{tpu_custom_call.1} parent=27 // pred_check_branch
          %462 = sbr.rel (%p459) target = $region44
        $region43: #{tpu_custom_call.1} parent=27 // pred_region
          %v463 = vld [vmem:[#allocation2] sm:$0xf]
          %464 = vst.msk [vmem:[%s270] sm:$0xf] %vm374, %v463
          %v465 = vld [vmem:[#allocation3] sm:$0xf]
          %466 = vst.msk [vmem:[%s274] sm:$0xf] %vm374, %v465
        $region44: #{tpu_custom_call.1} parent=27 // pred_fallthru
          _
        %p467 = scmp.lt.s32.totalorder %s26, 1
        %s468 = scalar_select %p467, %s26, 1
        %s469 = smul.addr %s468, 4
        %s470 = scalar_lea.vmem %s2, %s469
        %p471 = scmp.lt.s32.totalorder %s26, 1
        %s472 = scalar_select %p471, %s26, 1
        %s473 = smul.addr %s472, 4
        %s474 = scalar_lea.vmem %s3, %s473
        // Predicated region
        $region45: #{tpu_custom_call.1} parent=27 // pred_check
          %p475 = pneg %p118
        $region46: #{tpu_custom_call.1} parent=27 // pred_check_branch
          %477 = sbr.rel (%p475) target = $region48
        $region47: #{tpu_custom_call.1} parent=27 // pred_region
          _
        $region48: #{tpu_custom_call.1} parent=27 // pred_fallthru
          _
        // Predicated region
        $region49: #{tpu_custom_call.1} parent=27 // pred_check
          %p478 = pneg %p144
        $region50: #{tpu_custom_call.1} parent=27 // pred_check_branch
          %480 = sbr.rel (%p478) target = $region52
        $region51: #{tpu_custom_call.1} parent=27 // pred_region
          _
        $region52: #{tpu_custom_call.1} parent=27 // pred_fallthru
          _
      $region28: #{tpu_custom_call.1} parent=5 // pred_fallthru
        _
      %p481 = scmp.le.s32.totalorder 2, %s16
      // Predicated region
      $region53: #{tpu_custom_call.1} parent=5 // pred_check
        %p482 = pneg %p481
      $region54: #{tpu_custom_call.1} parent=5 // pred_check_branch
        %484 = sbr.rel (%p482) target = $region56
      $region55: #{tpu_custom_call.1} parent=5 // pred_region
        %s485 = ssub.s32 %s16, 2
        // Predicated region
        $region57: #{tpu_custom_call.1} parent=55 // pred_check
          %p486 = pneg %p124
        $region58: #{tpu_custom_call.1} parent=55 // pred_check_branch
          %488 = sbr.rel (%p486) target = $region60
        $region59: #{tpu_custom_call.1} parent=55 // pred_region
          %p489 = scmp.lt.s32.totalorder %s29, 1
          %s490 = scalar_select %p489, %s29, 1
          %s491 = smul.addr %s490, 4
          %s492 = scalar_lea.vmem %s2, %s491
        $region60: #{tpu_custom_call.1} parent=55 // pred_fallthru
          _
        // Predicated region
        $region61: #{tpu_custom_call.1} parent=55 // pred_check
          %p493 = pneg %p150
        $region62: #{tpu_custom_call.1} parent=55 // pred_check_branch
          %495 = sbr.rel (%p493) target = $region64
        $region63: #{tpu_custom_call.1} parent=55 // pred_region
          %p496 = scmp.lt.s32.totalorder %s29, 1
          %s497 = scalar_select %p496, %s29, 1
          %s498 = smul.addr %s497, 4
          %s499 = scalar_lea.vmem %s3, %s498
        $region64: #{tpu_custom_call.1} parent=55 // pred_fallthru
          _
      $region56: #{tpu_custom_call.1} parent=5 // pred_fallthru
        _
    $region6: #{tpu_custom_call.1} parent=1 // loop_footer
      %s20 = sadd.s32 1, %s16
    $region7: #{tpu_custom_call.1} parent=1 // loop_footer_branch
      %15 = sbr.rel target = $region3
    $region8: #{tpu_custom_call.1} parent=1 // loop_exit
      _
    %500 = vsyncpa [#allocation5], 1
    %s501 = scalar_lea.sflag [#allocation5], 1
    %502 = vsyncpa %s501, 1
    %503 = vsyncpa [#allocation7], 1
    %s504 = scalar_lea.sflag [#allocation7], 1
    %505 = vsyncpa %s504, 1

</llo_original>
